<compile_context>
chip_gen: v7x
topology: tpu7x:2x2x1
jax: 0.10.0
libtpu: 0.0.40
codegen_flags: <defaults>
</compile_context>

<pallas_src>
import functools

import jax
import jax.numpy as jnp
from jax.experimental import pallas as pl
from jax.experimental.pallas import tpu as pltpu


def _infonce_kernel(q_ref, kpos_ref, kneg_ref, out_ref,
                    m_sc, s_sc, pos_sc, *, inv_temp, n_valid, tile_n):
    # q_ref:    (TB, 1, D)    input dtype
    # kpos_ref: (TB, 1, D)    input dtype
    # kneg_ref: (TB, TN, D)   input dtype (streamed along the N grid axis)
    # out_ref:  (TB, 1, 128)  f32, loss broadcast along lanes (lane-dense store)
    # m_sc / s_sc / pos_sc: (TB, 1, 1) f32 running max / running sum / pos logit
    j = pl.program_id(1)
    last_j = pl.num_programs(1) - 1

    @pl.when(j == 0)
    def _init():
        # Positive logit (tiny, f32 on the VPU) seeds the running logsumexp:
        # m = pos, s = exp(pos - pos) = 1.
        q32 = q_ref[...].astype(jnp.float32)
        kp32 = kpos_ref[...].astype(jnp.float32)
        pos = jnp.sum(q32 * kp32, axis=2, keepdims=True) * inv_temp   # (TB,1,1)
        pos_sc[...] = pos
        m_sc[...] = pos
        s_sc[...] = jnp.ones_like(pos)

    # Negative logits for this N tile on the MXU with f32 accumulation; inputs
    # are NOT upcast so the dominant k_neg HBM stream stays at stored precision.
    # NOTE: the (TB, 1, TN) logit slab is sublane-sparse; packing it to (TB, TN)
    # would require a sublane relayout of the MXU result — kept 3-D (validated
    # batched-matmul pattern) since the softmax chain is hidden under the DMA.
    neg = jnp.einsum("bqd,bkd->bqk", q_ref[...], kneg_ref[...],
                     preferred_element_type=jnp.float32) * inv_temp   # (TB,1,TN)

    if n_valid % tile_n:  # static: only emitted when the N tiling is ragged
        # Gate the tail mask so iota/compare/select only run on the last tile.
        # Keep the select-style mask (NOT additive, NOT max-before-mask): the
        # padded tail of the last k_neg block is uninitialized VMEM and may
        # produce NaN/Inf logits that this select must discard.
        def _mask_tail(v):
            col = jax.lax.broadcasted_iota(jnp.int32, v.shape, 2) + j * tile_n
            return jnp.where(col < n_valid, v, -jnp.inf)

        neg = jax.lax.cond(j == last_j, _mask_tail, lambda v: v, neg)

    # Online (streaming) logsumexp update.
    m_prev = m_sc[...]
    m_new = jnp.maximum(m_prev, jnp.max(neg, axis=2, keepdims=True))   # (TB,1,1)
    alpha = jnp.exp(m_prev - m_new)
    s_sc[...] = alpha * s_sc[...] + jnp.sum(jnp.exp(neg - m_new), axis=2,
                                            keepdims=True)
    m_sc[...] = m_new

    @pl.when(j == last_j)
    def _finalize():
        # loss = logsumexp(all logits) - pos = m + log(s) - pos   (no divide)
        loss = m_sc[...] + jnp.log(s_sc[...]) - pos_sc[...]        # (TB,1,1)
        out_ref[...] = jnp.broadcast_to(loss, out_ref.shape)       # lane-dense


def _sublane_quantum(dtype) -> int:
    # Native sublane packing: 8 rows for 4-byte, 16 for 2-byte, 32 for 1-byte.
    return max(8, 32 // int(jnp.dtype(dtype).itemsize))


def _vmem_budgets():
    """Per-generation VMEM limit and k_neg tile byte budget."""
    cap = 64 * 1024 * 1024            # safe default (v7x has the least VMEM)
    try:
        cap = int(pltpu.get_tpu_info().vmem_capacity_bytes)
    except Exception:                 # field/name mismatch: keep the safe default
        pass
    # ~3/4 of physical, capped: ~48 MiB on v7x (64 MiB VMEM), 64 MiB on v5e/v6e.
    vmem_limit = min(cap - cap // 4, 64 * 1024 * 1024)
    # The k_neg tile is double-buffered by the pipeline; keep 2*tile well under
    # the limit (q/k_pos/out/scratch are tiny): ~9.6 MiB v7x, ~12.8 MiB v5e/v6e.
    tile_budget = max(4 * 1024 * 1024, min(vmem_limit // 5, 16 * 1024 * 1024))
    return vmem_limit, tile_budget


def _choose_tile_n(n, cap, quantum):
    """N tile <= cap, sublane-quantum aligned, preferring an exact divisor of n
    (so the ragged-tail mask is never emitted)."""
    if n <= cap:
        return n
    cap = max(quantum, (cap // quantum) * quantum)
    t = cap
    while t >= quantum:
        if n % t == 0:
            break
        t -= quantum
    if t >= quantum and t >= cap // 2:
        return t          # big enough divisor: tail-free tiling
    return cap            # ragged tail; masked (lax.cond-gated) in the kernel


def infonce(q, k_pos, k_neg, temperature: float = 0.07, *,
            downcast_to_bf16: bool = False):
    """InfoNCE forward. q/k_pos: (B, D); k_neg: (B, N, D). Returns (B,) f32."""
    B, D = q.shape
    assert k_pos.shape == (B, D)
    Bn, N, Dn = k_neg.shape
    assert Bn == B and Dn == D

    # Optional API-level precision trade: the kernel is a pure HBM stream of
    # k_neg, so halving its itemsize ~halves wall-clock; accumulation stays f32.
    if downcast_to_bf16 and q.dtype == jnp.float32:
        q = q.astype(jnp.bfloat16)
        k_pos = k_pos.astype(jnp.bfloat16)
        k_neg = k_neg.astype(jnp.bfloat16)

    itemsize = int(jnp.dtype(k_neg.dtype).itemsize)
    quantum = _sublane_quantum(k_neg.dtype)
    vmem_limit, tile_budget = _vmem_budgets()

    # --- Tile selection -----------------------------------------------------
    # Start from a small B tile, maximize the streamed N tile inside the byte
    # budget, then grow the B tile only if the N axis alone cannot fill it.
    tile_b0 = min(B, 8)
    tn_cap = max(quantum,
                 (tile_budget // max(1, tile_b0 * D * itemsize)) // quantum * quantum)
    tile_n = _choose_tile_n(N, tn_cap, quantum)

    tb_cap = max(8, (tile_budget // max(1, tile_n * D * itemsize)) // 8 * 8)
    # Keep >= 2 tiles on the "parallel" B axis (when B >= 16) so both v7x
    # TensorCores get work; no effect on v5e/v6e (1 TC).
    half_b = ((B + 1) // 2 + 7) // 8 * 8
    tile_b = max(1, min(B, tb_cap, max(8, half_b), 128))

    grid = (pl.cdiv(B, tile_b), pl.cdiv(N, tile_n))

    # Free XLA reshapes: explicit unit "query" dim so the kernel runs the
    # standard batched (bqd,bkd->bqk) MXU contraction with no in-kernel reshape.
    q3 = q[:, None, :]
    kp3 = k_pos[:, None, :]

    kernel = functools.partial(_infonce_kernel,
                               inv_temp=float(1.0 / temperature),
                               n_valid=N, tile_n=tile_n)

    n_tiles_n = -(-N // tile_n)
    cost = pl.CostEstimate(
        flops=2 * B * N * D + 2 * B * D + 6 * B * N,
        transcendentals=B * N + B * n_tiles_n + B,
        bytes_accessed=(q3.size * q3.dtype.itemsize
                        + kp3.size * kp3.dtype.itemsize
                        + k_neg.size * itemsize
                        + B * 128 * 4),
    )

    out = pl.pallas_call(
        kernel,
        out_shape=jax.ShapeDtypeStruct((B, 1, 128), jnp.float32),
        grid=grid,
        in_specs=[
            pl.BlockSpec((tile_b, 1, D), lambda i, j: (i, 0, 0)),
            pl.BlockSpec((tile_b, 1, D), lambda i, j: (i, 0, 0)),
            pl.BlockSpec((tile_b, tile_n, D), lambda i, j: (i, j, 0)),
        ],
        # Same output block across the N axis => VMEM-resident across the
        # reduction. A ragged last B tile computes on garbage rows, but those
        # rows are clipped on writeback — do not "optimize" the clipping away.
        out_specs=pl.BlockSpec((tile_b, 1, 128), lambda i, j: (i, 0, 0)),
        scratch_shapes=[
            pltpu.VMEM((tile_b, 1, 1), jnp.float32),  # running max
            pltpu.VMEM((tile_b, 1, 1), jnp.float32),  # running sum
            pltpu.VMEM((tile_b, 1, 1), jnp.float32),  # positive logit
        ],
        compiler_params=pltpu.CompilerParams(
            dimension_semantics=("parallel", "arbitrary"),
            vmem_limit_bytes=int(vmem_limit),
        ),
        cost_estimate=cost,
    )(q3, kp3, k_neg)

    return out[:, 0, 0]


def _infonce_ref(q, k_pos, k_neg, temperature: float = 0.07):
    num = jnp.exp(jnp.sum(q * k_pos, axis=1) / temperature)
    denom = num + jnp.sum(
        jnp.exp(jnp.sum(q[:, None, :] * k_neg, axis=2) / temperature), axis=1
    )
    return -jnp.log(num / denom)


if __name__ == "__main__":
    B, N, D = 8, 16, 32  # batch, num negatives, embedding dim
    key = jax.random.PRNGKey(0)
    kq, kp, kn = jax.random.split(key, 3)

    # Normalized embeddings (typical InfoNCE usage) keep exp() well-behaved.
    q = jax.random.normal(kq, (B, D), dtype=jnp.float32)
    q = q / jnp.linalg.norm(q, axis=1, keepdims=True)
    k_pos = jax.random.normal(kp, (B, D), dtype=jnp.float32)
    k_pos = k_pos / jnp.linalg.norm(k_pos, axis=1, keepdims=True)
    k_neg = jax.random.normal(kn, (B, N, D), dtype=jnp.float32)
    k_neg = k_neg / jnp.linalg.norm(k_neg, axis=2, keepdims=True)

    out = infonce(q, k_pos, k_neg)
    out = jax.block_until_ready(out)

    ref = _infonce_ref(q, k_pos, k_neg)
    assert out.shape == (B,)
    assert jnp.allclose(out, ref, rtol=1e-3, atol=1e-3), (out, ref)

    print("KERNEL_OK")
</pallas_src>

<mosaic_0001>
module attributes {stable_mosaic.version = 11 : i64} {
  func.func @_infonce_kernel(%arg0: i32, %arg1: i32, %arg2: memref<8x1x32xf32, #tpu.memory_space<vmem>>, %arg3: memref<8x1x32xf32, #tpu.memory_space<vmem>>, %arg4: memref<8x16x32xf32, #tpu.memory_space<vmem>>, %arg5: memref<8x1x128xf32, #tpu.memory_space<vmem>>, %arg6: memref<8x1x1xf32, #tpu.memory_space<vmem>>, %arg7: memref<8x1x1xf32, #tpu.memory_space<vmem>>, %arg8: memref<8x1x1xf32, #tpu.memory_space<vmem>>) attributes {dimension_semantics = [#tpu.dimension_semantics<parallel>, #tpu.dimension_semantics<arbitrary>], iteration_bounds = array<i64: 1, 1>, scalar_prefetch = 0 : i64, scratch_operands = 3 : i64, tpu.core_type = #tpu.core_type<tc>, window_params = [{transform_indices = @transform_0, window_bounds = array<i64: 8, 1, 32>}, {transform_indices = @transform_1, window_bounds = array<i64: 8, 1, 32>}, {transform_indices = @transform_2, window_bounds = array<i64: 8, 16, 32>}, {transform_indices = @transform_3, window_bounds = array<i64: 8, 1, 128>}]} {
    %c0_i32 = arith.constant 0 : i32
    %0 = arith.cmpi eq, %arg1, %c0_i32 : i32
    %1 = arith.extui %0 : i1 to i32
    %c0_i32_0 = arith.constant 0 : i32
    %2 = arith.cmpi ne, %1, %c0_i32_0 : i32
    scf.if %2 {
      %c0_23 = arith.constant 0 : index
      %c0_24 = arith.constant 0 : index
      %c0_25 = arith.constant 0 : index
      %27 = vector.load %arg2[%c0_23, %c0_24, %c0_25] : memref<8x1x32xf32, #tpu.memory_space<vmem>>, vector<8x1x32xf32>
      %c0_26 = arith.constant 0 : index
      %c0_27 = arith.constant 0 : index
      %c0_28 = arith.constant 0 : index
      %28 = vector.load %arg3[%c0_26, %c0_27, %c0_28] : memref<8x1x32xf32, #tpu.memory_space<vmem>>, vector<8x1x32xf32>
      %29 = arith.mulf %27, %28 : vector<8x1x32xf32>
      %cst_29 = arith.constant dense<0.000000e+00> : vector<8x1xf32>
      %30 = vector.multi_reduction <add>, %29, %cst_29 [2] : vector<8x1x32xf32> to vector<8x1xf32>
      %31 = vector.shape_cast %30 : vector<8x1xf32> to vector<8x1x1xf32>
      %cst_30 = arith.constant 14.2857141 : f32
      %32 = vector.broadcast %cst_30 : f32 to vector<8x1x1xf32>
      %33 = arith.mulf %31, %32 : vector<8x1x1xf32>
      %c0_31 = arith.constant 0 : index
      %c0_32 = arith.constant 0 : index
      %c0_33 = arith.constant 0 : index
      %34 = vector.load %arg8[%c0_31, %c0_32, %c0_33] : memref<8x1x1xf32, #tpu.memory_space<vmem>>, vector<8x1x1xf32>
      tpu.vector_store %arg8[%c0_31, %c0_32, %c0_33], %33 {strides = array<i32>} : memref<8x1x1xf32, #tpu.memory_space<vmem>>, vector<8x1x1xf32>,
      %c0_34 = arith.constant 0 : index
      %c0_35 = arith.constant 0 : index
      %c0_36 = arith.constant 0 : index
      %35 = vector.load %arg6[%c0_34, %c0_35, %c0_36] : memref<8x1x1xf32, #tpu.memory_space<vmem>>, vector<8x1x1xf32>
      tpu.vector_store %arg6[%c0_34, %c0_35, %c0_36], %33 {strides = array<i32>} : memref<8x1x1xf32, #tpu.memory_space<vmem>>, vector<8x1x1xf32>,
      %cst_37 = arith.constant 1.000000e+00 : f32
      %36 = vector.broadcast %cst_37 : f32 to vector<8x1x1xf32>
      %c0_38 = arith.constant 0 : index
      %c0_39 = arith.constant 0 : index
      %c0_40 = arith.constant 0 : index
      %37 = vector.load %arg7[%c0_38, %c0_39, %c0_40] : memref<8x1x1xf32, #tpu.memory_space<vmem>>, vector<8x1x1xf32>
      tpu.vector_store %arg7[%c0_38, %c0_39, %c0_40], %36 {strides = array<i32>} : memref<8x1x1xf32, #tpu.memory_space<vmem>>, vector<8x1x1xf32>,
    } else {
    }
    %c0 = arith.constant 0 : index
    %c0_1 = arith.constant 0 : index
    %c0_2 = arith.constant 0 : index
    %3 = vector.load %arg2[%c0, %c0_1, %c0_2] : memref<8x1x32xf32, #tpu.memory_space<vmem>>, vector<8x1x32xf32>
    %c0_3 = arith.constant 0 : index
    %c0_4 = arith.constant 0 : index
    %c0_5 = arith.constant 0 : index
    %4 = vector.load %arg4[%c0_3, %c0_4, %c0_5] : memref<8x16x32xf32, #tpu.memory_space<vmem>>, vector<8x16x32xf32>
    "tpu.trace_start"() <{level = 10 : i32, message = "bqd,bkd->bqk"}> : () -> ()
    %cst = arith.constant dense<0.000000e+00> : vector<8x1x16xf32>
    %5 = tpu.matmul %3, %4, %cst {dimension_numbers = #tpu.dot_dimension_numbers<[2], [2], [1], [1], [0, 0, 0, 1, 1, 1], [0], [0]>} : vector<8x1x32xf32>, vector<8x16x32xf32>, vector<8x1x16xf32> -> vector<8x1x16xf32>
    "tpu.trace_stop"() : () -> ()
    %cst_6 = arith.constant 14.2857141 : f32
    %6 = vector.broadcast %cst_6 : f32 to vector<8x1x16xf32>
    %7 = arith.mulf %5, %6 : vector<8x1x16xf32>
    %c0_7 = arith.constant 0 : index
    %c0_8 = arith.constant 0 : index
    %c0_9 = arith.constant 0 : index
    %8 = vector.load %arg6[%c0_7, %c0_8, %c0_9] : memref<8x1x1xf32, #tpu.memory_space<vmem>>, vector<8x1x1xf32>
    %cst_10 = arith.constant dense<0xFF800000> : vector<8x1xf32>
    %9 = vector.multi_reduction <maximumf>, %7, %cst_10 [2] : vector<8x1x16xf32> to vector<8x1xf32>
    %10 = vector.shape_cast %9 : vector<8x1xf32> to vector<8x1x1xf32>
    %11 = arith.maximumf %8, %10 : vector<8x1x1xf32>
    %12 = arith.subf %8, %11 : vector<8x1x1xf32>
    %13 = math.exp %12 : vector<8x1x1xf32>
    %c0_11 = arith.constant 0 : index
    %c0_12 = arith.constant 0 : index
    %c0_13 = arith.constant 0 : index
    %14 = vector.load %arg7[%c0_11, %c0_12, %c0_13] : memref<8x1x1xf32, #tpu.memory_space<vmem>>, vector<8x1x1xf32>
    %15 = arith.mulf %13, %14 : vector<8x1x1xf32>
    %16 = vector.broadcast %11 : vector<8x1x1xf32> to vector<8x1x16xf32>
    %17 = arith.subf %7, %16 : vector<8x1x16xf32>
    %18 = math.exp %17 : vector<8x1x16xf32>
    %cst_14 = arith.constant dense<0.000000e+00> : vector<8x1xf32>
    %19 = vector.multi_reduction <add>, %18, %cst_14 [2] : vector<8x1x16xf32> to vector<8x1xf32>
    %20 = vector.shape_cast %19 : vector<8x1xf32> to vector<8x1x1xf32>
    %21 = arith.addf %15, %20 : vector<8x1x1xf32>
    %c0_15 = arith.constant 0 : index
    %c0_16 = arith.constant 0 : index
    %c0_17 = arith.constant 0 : index
    %22 = vector.load %arg7[%c0_15, %c0_16, %c0_17] : memref<8x1x1xf32, #tpu.memory_space<vmem>>, vector<8x1x1xf32>
    tpu.vector_store %arg7[%c0_15, %c0_16, %c0_17], %21 {strides = array<i32>} : memref<8x1x1xf32, #tpu.memory_space<vmem>>, vector<8x1x1xf32>,
    %c0_18 = arith.constant 0 : index
    %c0_19 = arith.constant 0 : index
    %c0_20 = arith.constant 0 : index
    %23 = vector.load %arg6[%c0_18, %c0_19, %c0_20] : memref<8x1x1xf32, #tpu.memory_space<vmem>>, vector<8x1x1xf32>
    tpu.vector_store %arg6[%c0_18, %c0_19, %c0_20], %11 {strides = array<i32>} : memref<8x1x1xf32, #tpu.memory_space<vmem>>, vector<8x1x1xf32>,
    %c0_i32_21 = arith.constant 0 : i32
    %24 = arith.cmpi eq, %arg1, %c0_i32_21 : i32
    %25 = arith.extui %24 : i1 to i32
    %c0_i32_22 = arith.constant 0 : i32
    %26 = arith.cmpi ne, %25, %c0_i32_22 : i32
    scf.if %26 {
      %c0_23 = arith.constant 0 : index
      %c0_24 = arith.constant 0 : index
      %c0_25 = arith.constant 0 : index
      %27 = vector.load %arg6[%c0_23, %c0_24, %c0_25] : memref<8x1x1xf32, #tpu.memory_space<vmem>>, vector<8x1x1xf32>
      %c0_26 = arith.constant 0 : index
      %c0_27 = arith.constant 0 : index
      %c0_28 = arith.constant 0 : index
      %28 = vector.load %arg7[%c0_26, %c0_27, %c0_28] : memref<8x1x1xf32, #tpu.memory_space<vmem>>, vector<8x1x1xf32>
      %29 = math.log %28 : vector<8x1x1xf32>
      %30 = arith.addf %27, %29 : vector<8x1x1xf32>
      %c0_29 = arith.constant 0 : index
      %c0_30 = arith.constant 0 : index
      %c0_31 = arith.constant 0 : index
      %31 = vector.load %arg8[%c0_29, %c0_30, %c0_31] : memref<8x1x1xf32, #tpu.memory_space<vmem>>, vector<8x1x1xf32>
      %32 = arith.subf %30, %31 : vector<8x1x1xf32>
      %33 = vector.shape_cast %32 : vector<8x1x1xf32> to vector<8x1x1xf32>
      %34 = vector.broadcast %33 : vector<8x1x1xf32> to vector<8x1x128xf32>
      %c0_32 = arith.constant 0 : index
      %c0_33 = arith.constant 0 : index
      %c0_34 = arith.constant 0 : index
      %35 = vector.load %arg5[%c0_32, %c0_33, %c0_34] : memref<8x1x128xf32, #tpu.memory_space<vmem>>, vector<8x1x128xf32>
      tpu.vector_store %arg5[%c0_32, %c0_33, %c0_34], %34 {strides = array<i32>} : memref<8x1x128xf32, #tpu.memory_space<vmem>>, vector<8x1x128xf32>,
    } else {
    }
    return
  }
  func.func @transform_0(%arg0: i32, %arg1: i32) -> (i32, i32, i32) {
    %c0_i32 = arith.constant 0 : i32
    %c0_i32_0 = arith.constant 0 : i32
    %c0_i32_1 = arith.constant 0 : i32
    return %arg0, %c0_i32, %c0_i32_0 : i32, i32, i32
  }
  func.func @transform_1(%arg0: i32, %arg1: i32) -> (i32, i32, i32) {
    %c0_i32 = arith.constant 0 : i32
    %c0_i32_0 = arith.constant 0 : i32
    %c0_i32_1 = arith.constant 0 : i32
    return %arg0, %c0_i32, %c0_i32_0 : i32, i32, i32
  }
  func.func @transform_2(%arg0: i32, %arg1: i32) -> (i32, i32, i32) {
    %c0_i32 = arith.constant 0 : i32
    %c0_i32_0 = arith.constant 0 : i32
    return %arg0, %arg1, %c0_i32 : i32, i32, i32
  }
  func.func @transform_3(%arg0: i32, %arg1: i32) -> (i32, i32, i32) {
    %c0_i32 = arith.constant 0 : i32
    %c0_i32_0 = arith.constant 0 : i32
    %c0_i32_1 = arith.constant 0 : i32
    return %arg0, %c0_i32, %c0_i32_0 : i32, i32, i32
  }
}

</mosaic_0001>

<llo_original>
// kernel: tpu_custom_call.1
$region0: #{tpu_custom_call.1}
  #allocation0 [shape = 'u32[]', space=smem, size = 0x4, offset = 0x4, fixed_abs, tag = 'smem constant byte address 0x4 - core index']
  #allocation1 [shape = 'u32[144,128]{1,0:T(1,128)}', space=vmem, size = 0x12000, scoped, tag = 'internal scratch']
  #allocation2 [shape = 'f32[8,1,1]{2,1,0:T(1,128)}', space=vmem, size = 0x1000, scoped, tag = 'scratch operand']
  #allocation3 [shape = 'f32[8,1,1]{2,1,0:T(1,128)}', space=vmem, size = 0x1000, scoped, tag = 'scratch operand']
  #allocation4 [shape = 'f32[8,1,1]{2,1,0:T(1,128)}', space=vmem, size = 0x1000, scoped, tag = 'scratch operand']
  %s0 = inlined_call_operand.hbm [shape: f32[8,1,32], index: 0, kind: input, shape index: {}]
  %s1 = inlined_call_operand.hbm [shape: f32[8,1,32], index: 1, kind: input, shape index: {}]
  %s2 = inlined_call_operand.hbm [shape: f32[8,16,32], index: 2, kind: input, shape index: {}]
  %s3 = inlined_call_operand.hbm [shape: f32[8,1,128], index: 3, kind: output, shape index: {}]
  %s4 = sld [smem:[#allocation0]]
  $region42: #{tpu_custom_call.1} parent=0
    _
  %s6 = ssub.s32 1, %s4
  %s7 = scalar_select 0, %s6, %s4
  $region1: #{tpu_custom_call.1} parent=0
    #allocation5 [shape = 'u8[4096]{0}', space=vmem, size = 0x1000, scoped, tag = 'input window, operand 0, single buffered']
    #allocation6 [shape = 's32[1]{0}', space=sflag, size = 0x4, scoped, tag = 'scoped memory for tpu_custom_call.1']
    #allocation7 [shape = 's32[1]{0}', space=sflag, size = 0x4, scoped, tag = 'scoped memory for tpu_custom_call.1']
    #allocation8 [shape = 'u8[4096]{0}', space=vmem, size = 0x1000, scoped, tag = 'input window, operand 1, single buffered']
    #allocation9 [shape = 's32[1]{0}', space=sflag, size = 0x4, scoped, tag = 'scoped memory for tpu_custom_call.1']
    #allocation10 [shape = 'u8[65536]{0}', space=vmem, size = 0x10000, scoped, tag = 'input window, operand 2, single buffered']
    #allocation11 [shape = 'u8[4096]{0}', space=vmem, size = 0x1000, scoped, tag = 'output window, operand 0, single buffered']
    %8 = vsyncpa [#allocation6], 0
    %9 = vsyncpa [#allocation9], 0
    %10 = vsyncpa [#allocation7], 0
    // Predicated region
    $region2: #{tpu_custom_call.1} parent=1 // pred_check
      _
    $region3: #{tpu_custom_call.1} parent=1 // pred_check_branch
      %12 = sbr.rel (0) target = $region5
    $region4: #{tpu_custom_call.1} parent=1 // pred_region
      %s14 = ssub.s32 128, 128
      %15 = vsyncadd [#allocation6], %s14
      %s16 = sshll.u32 [#allocation5], 4
      %s17 = int_to_ptr.vmem [resolvable:$true] %s16
      %22 = dma.hbm_to_vmem [thread:$0]  %s0, 128, %s17, [#allocation6], 16, 16, 1
    $region5: #{tpu_custom_call.1} parent=1 // pred_fallthru
      _
    // Predicated region
    $region6: #{tpu_custom_call.1} parent=1 // pred_check
      _
    $region7: #{tpu_custom_call.1} parent=1 // pred_check_branch
      %24 = sbr.rel (0) target = $region9
    $region8: #{tpu_custom_call.1} parent=1 // pred_region
      %s26 = ssub.s32 128, 128
      %27 = vsyncadd [#allocation9], %s26
      %s28 = sshll.u32 [#allocation8], 4
      %s29 = int_to_ptr.vmem [resolvable:$true] %s28
      %34 = dma.hbm_to_vmem [thread:$0]  %s1, 128, %s29, [#allocation9], 16, 16, 1
    $region9: #{tpu_custom_call.1} parent=1 // pred_fallthru
      _
    // Predicated region
    $region10: #{tpu_custom_call.1} parent=1 // pred_check
      _
    $region11: #{tpu_custom_call.1} parent=1 // pred_check_branch
      %36 = sbr.rel (0) target = $region13
    $region12: #{tpu_custom_call.1} parent=1 // pred_region
      %s38 = ssub.s32 2048, 2048
      %39 = vsyncadd [#allocation9], %s38
      %s40 = sshll.u32 [#allocation10], 4
      %s41 = int_to_ptr.vmem [resolvable:$true] %s40
      %46 = dma.hbm_to_vmem [thread:$0]  %s2, 2048, %s41, [#allocation9], 128, 128, 8
    $region13: #{tpu_custom_call.1} parent=1 // pred_fallthru
      _
    // Predicated region
    $region14: #{tpu_custom_call.1} parent=1 // pred_check
      _
    $region15: #{tpu_custom_call.1} parent=1 // pred_check_branch
      %48 = sbr.rel (0) target = $region17
    $region16: #{tpu_custom_call.1} parent=1 // pred_region
      %49 = dma.done [#allocation6], 128
    $region17: #{tpu_custom_call.1} parent=1 // pred_fallthru
      _
    // Predicated region
    $region18: #{tpu_custom_call.1} parent=1 // pred_check
      _
    $region19: #{tpu_custom_call.1} parent=1 // pred_check_branch
      %51 = sbr.rel (0) target = $region21
    $region20: #{tpu_custom_call.1} parent=1 // pred_region
      %52 = dma.done [#allocation9], 128
    $region21: #{tpu_custom_call.1} parent=1 // pred_fallthru
      _
    // Predicated region
    $region22: #{tpu_custom_call.1} parent=1 // pred_check
      _
    $region23: #{tpu_custom_call.1} parent=1 // pred_check_branch
      %54 = sbr.rel (0) target = $region25
    $region24: #{tpu_custom_call.1} parent=1 // pred_region
      %55 = dma.done [#allocation9], 2048
    $region25: #{tpu_custom_call.1} parent=1 // pred_fallthru
      _
    %p56 = scmp.eq.s32.totalorder 0, 0
    // Predicated region
    $region26: #{tpu_custom_call.1} parent=1 // pred_check
      %p57 = pneg %p56
    $region27: #{tpu_custom_call.1} parent=1 // pred_check_branch
      %59 = sbr.rel (%p57) target = $region29
    $region28: #{tpu_custom_call.1} parent=1 // pred_region
      %v60 = vld [vmem:[#allocation5] sm:$0x1]
      %v61 = vld [vmem:[#allocation5 + $0x1] sm:$0x1]
      %v62 = vld [vmem:[#allocation5 + $0x2] sm:$0x1]
      %v63 = vld [vmem:[#allocation5 + $0x3] sm:$0x1]
      %v64 = vld [vmem:[#allocation5 + $0x4] sm:$0x1]
      %v65 = vld [vmem:[#allocation5 + $0x5] sm:$0x1]
      %v66 = vld [vmem:[#allocation5 + $0x6] sm:$0x1]
      %v67 = vld [vmem:[#allocation5 + $0x7] sm:$0x1]
      %v68 = vld [vmem:[#allocation8] sm:$0x1]
      %v69 = vld [vmem:[#allocation8 + $0x1] sm:$0x1]
      %v70 = vld [vmem:[#allocation8 + $0x2] sm:$0x1]
      %v71 = vld [vmem:[#allocation8 + $0x3] sm:$0x1]
      %v72 = vld [vmem:[#allocation8 + $0x4] sm:$0x1]
      %v73 = vld [vmem:[#allocation8 + $0x5] sm:$0x1]
      %v74 = vld [vmem:[#allocation8 + $0x6] sm:$0x1]
      %v75 = vld [vmem:[#allocation8 + $0x7] sm:$0x1]
      %v76 = vmul.f32 %v60, %v68
      %v77 = vmul.f32 %v61, %v69
      %v78 = vmul.f32 %v62, %v70
      %v79 = vmul.f32 %v63, %v71
      %v80 = vmul.f32 %v64, %v72
      %v81 = vmul.f32 %v65, %v73
      %v82 = vmul.f32 %v66, %v74
      %v83 = vmul.f32 %v67, %v75
      %vm84 = vcmask 253952
      %v85 = vsel %vm84, %v76, 0.0
      %86 = vadd.xlane.f32.xlu0 %v85
      %v87 = vpop.xlane.xlu0 %86
      %v88 = vsel %vm84, %v77, 0.0
      %89 = vadd.xlane.f32.xlu0 %v88
      %v90 = vpop.xlane.xlu0 %89
      %v91 = vsel %vm84, %v78, 0.0
      %92 = vadd.xlane.f32.xlu0 %v91
      %v93 = vpop.xlane.xlu0 %92
      %v94 = vsel %vm84, %v79, 0.0
      %95 = vadd.xlane.f32.xlu0 %v94
      %v96 = vpop.xlane.xlu0 %95
      %v97 = vsel %vm84, %v80, 0.0
      %98 = vadd.xlane.f32.xlu0 %v97
      %v99 = vpop.xlane.xlu0 %98
      %v100 = vsel %vm84, %v81, 0.0
      %101 = vadd.xlane.f32.xlu0 %v100
      %v102 = vpop.xlane.xlu0 %101
      %v103 = vsel %vm84, %v82, 0.0
      %104 = vadd.xlane.f32.xlu0 %v103
      %v105 = vpop.xlane.xlu0 %104
      %v106 = vsel %vm84, %v83, 0.0
      %107 = vadd.xlane.f32.xlu0 %v106
      %v108 = vpop.xlane.xlu0 %107
      %v109 = vmul.f32 %v87, 14.285714
      %v110 = vmul.f32 %v90, 14.285714
      %v111 = vmul.f32 %v93, 14.285714
      %v112 = vmul.f32 %v96, 14.285714
      %v113 = vmul.f32 %v99, 14.285714
      %v114 = vmul.f32 %v102, 14.285714
      %v115 = vmul.f32 %v105, 14.285714
      %v116 = vmul.f32 %v108, 14.285714
      %vm117 = vcmask 0
      %118 = vst.msk [vmem:[#allocation4] sm:$0x1] %vm117, %v109
      %119 = vst.msk [vmem:[#allocation4 + $0x1] sm:$0x1] %vm117, %v110
      %120 = vst.msk [vmem:[#allocation4 + $0x2] sm:$0x1] %vm117, %v111
      %121 = vst.msk [vmem:[#allocation4 + $0x3] sm:$0x1] %vm117, %v112
      %122 = vst.msk [vmem:[#allocation4 + $0x4] sm:$0x1] %vm117, %v113
      %123 = vst.msk [vmem:[#allocation4 + $0x5] sm:$0x1] %vm117, %v114
      %124 = vst.msk [vmem:[#allocation4 + $0x6] sm:$0x1] %vm117, %v115
      %125 = vst.msk [vmem:[#allocation4 + $0x7] sm:$0x1] %vm117, %v116
      %126 = vst.msk [vmem:[#allocation2] sm:$0x1] %vm117, %v109
      %127 = vst.msk [vmem:[#allocation2 + $0x1] sm:$0x1] %vm117, %v110
      %128 = vst.msk [vmem:[#allocation2 + $0x2] sm:$0x1] %vm117, %v111
      %129 = vst.msk [vmem:[#allocation2 + $0x3] sm:$0x1] %vm117, %v112
      %130 = vst.msk [vmem:[#allocation2 + $0x4] sm:$0x1] %vm117, %v113
      %131 = vst.msk [vmem:[#allocation2 + $0x5] sm:$0x1] %vm117, %v114
      %132 = vst.msk [vmem:[#allocation2 + $0x6] sm:$0x1] %vm117, %v115
      %133 = vst.msk [vmem:[#allocation2 + $0x7] sm:$0x1] %vm117, %v116
      %134 = vst.msk [vmem:[#allocation3] sm:$0x1] %vm117, 1.0
      %135 = vst.msk [vmem:[#allocation3 + $0x1] sm:$0x1] %vm117, 1.0
      %136 = vst.msk [vmem:[#allocation3 + $0x2] sm:$0x1] %vm117, 1.0
      %137 = vst.msk [vmem:[#allocation3 + $0x3] sm:$0x1] %vm117, 1.0
      %138 = vst.msk [vmem:[#allocation3 + $0x4] sm:$0x1] %vm117, 1.0
      %139 = vst.msk [vmem:[#allocation3 + $0x5] sm:$0x1] %vm117, 1.0
      %140 = vst.msk [vmem:[#allocation3 + $0x6] sm:$0x1] %vm117, 1.0
      %141 = vst.msk [vmem:[#allocation3 + $0x7] sm:$0x1] %vm117, 1.0
    $region29: #{tpu_custom_call.1} parent=1 // pred_fallthru
      _
    %v142 = vld [vmem:[#allocation5] sm:$0x1]
    %v143 = vld [vmem:[#allocation5 + $0x1] sm:$0x1]
    %v144 = vld [vmem:[#allocation5 + $0x2] sm:$0x1]
    %v145 = vld [vmem:[#allocation5 + $0x3] sm:$0x1]
    %v146 = vld [vmem:[#allocation5 + $0x4] sm:$0x1]
    %v147 = vld [vmem:[#allocation5 + $0x5] sm:$0x1]
    %v148 = vld [vmem:[#allocation5 + $0x6] sm:$0x1]
    %v149 = vld [vmem:[#allocation5 + $0x7] sm:$0x1]
    %v150 = vld [vmem:[#allocation10] sm:$0xff]
    %v151 = vld [vmem:[#allocation10 + $0x8] sm:$0xff]
    %v152 = vld [vmem:[#allocation10 + $0x10] sm:$0xff]
    %v153 = vld [vmem:[#allocation10 + $0x18] sm:$0xff]
    %v154 = vld [vmem:[#allocation10 + $0x20] sm:$0xff]
    %v155 = vld [vmem:[#allocation10 + $0x28] sm:$0xff]
    %v156 = vld [vmem:[#allocation10 + $0x30] sm:$0xff]
    %v157 = vld [vmem:[#allocation10 + $0x38] sm:$0xff]
    %v158 = vld [vmem:[#allocation10 + $0x40] sm:$0xff]
    %v159 = vld [vmem:[#allocation10 + $0x48] sm:$0xff]
    %v160 = vld [vmem:[#allocation10 + $0x50] sm:$0xff]
    %v161 = vld [vmem:[#allocation10 + $0x58] sm:$0xff]
    %v162 = vld [vmem:[#allocation10 + $0x60] sm:$0xff]
    %v163 = vld [vmem:[#allocation10 + $0x68] sm:$0xff]
    %v164 = vld [vmem:[#allocation10 + $0x70] sm:$0xff]
    %v165 = vld [vmem:[#allocation10 + $0x78] sm:$0xff]
    %vm166 = vcmask 261120
    %v168 = vsel %vm166, %v142, 0
    %v171 = vsel %vm166, %v150, 0
    %v174 = vsel %vm166, %v151, 0
    %176 = vmatprep.subr.mxu0 0.0
    %177 = vmatpush1.xpose.msra.mxu0 %v171
    %178 = vmatprep.subr.mxu0 0.0
    %179 = vmatpush1.xpose.msra.mxu0 %v174
    %180 = vmatprep.subr.mxu0 0.0
    %181 = vmatpush1.xpose.msra.mxu0 0.0
    %182 = vmatprep.subr.mxu0 0.0
    %183 = vmatpush1.xpose.msra.mxu0 0.0
    %184 = vmatprep.subr.mxu0 0.0
    %185 = vmatpush1.xpose.msra.mxu0 0.0
    %186 = vmatprep.subr.mxu0 0.0
    %187 = vmatpush1.xpose.msra.mxu0 0.0
    %188 = vmatprep.subr.mxu0 0.0
    %189 = vmatpush1.xpose.msra.mxu0 0.0
    %190 = vmatprep.subr.mxu0 0.0
    %191 = vmatpush1.xpose.msra.mxu0 0.0
    %192 = vmatprep.subr.mxu0 0.0
    %193 = vmatpush1.xpose.msra.mxu0 0.0
    %194 = vmatprep.subr.mxu0 0.0
    %195 = vmatpush1.xpose.msra.mxu0 0.0
    %196 = vmatprep.subr.mxu0 0.0
    %197 = vmatpush1.xpose.msra.mxu0 0.0
    %198 = vmatprep.subr.mxu0 0.0
    %199 = vmatpush1.xpose.msra.mxu0 0.0
    %200 = vmatprep.subr.mxu0 0.0
    %201 = vmatpush1.xpose.msra.mxu0 0.0
    %202 = vmatprep.subr.mxu0 0.0
    %203 = vmatpush1.xpose.msra.mxu0 0.0
    %204 = vmatprep.subr.mxu0 0.0
    %205 = vmatpush1.xpose.msra.mxu0 0.0
    %206 = vmatprep.subr.mxu0 0.0
    %207 = vmatpush1.xpose.msra.mxu0 0.0
    %208 = vmatprep.subr.mxu0 0.0
    %209 = vmatpush1.xpose.msra.mxu0 0.0
    %210 = vmatprep.subr.mxu0 0.0
    %211 = vmatpush1.xpose.msra.mxu0 0.0
    %212 = vmatprep.subr.mxu0 0.0
    %213 = vmatpush1.xpose.msra.mxu0 0.0
    %214 = vmatprep.subr.mxu0 0.0
    %215 = vmatpush1.xpose.msra.mxu0 0.0
    %216 = vmatprep.subr.mxu0 0.0
    %217 = vmatpush1.xpose.msra.mxu0 0.0
    %218 = vmatprep.subr.mxu0 0.0
    %219 = vmatpush1.xpose.msra.mxu0 0.0
    %220 = vmatprep.subr.mxu0 0.0
    %221 = vmatpush1.xpose.msra.mxu0 0.0
    %222 = vmatprep.subr.mxu0 0.0
    %223 = vmatpush1.xpose.msra.mxu0 0.0
    %224 = vmatprep.subr.mxu0 0.0
    %225 = vmatpush1.xpose.msra.mxu0 0.0
    %226 = vmatprep.subr.mxu0 0.0
    %227 = vmatpush1.xpose.msra.mxu0 0.0
    %228 = vmatprep.subr.mxu0 0.0
    %229 = vmatpush1.xpose.msra.mxu0 0.0
    %230 = vmatprep.subr.mxu0 0.0
    %231 = vmatpush1.xpose.msra.mxu0 0.0
    %232 = vmatprep.subr.mxu0 0.0
    %233 = vmatpush1.xpose.msra.mxu0 0.0
    %234 = vmatprep.subr.mxu0 0.0
    %235 = vmatpush1.xpose.msra.mxu0 0.0
    %236 = vmatprep.subr.mxu0 0.0
    %237 = vmatpush1.xpose.msra.mxu0 0.0
    %238 = vmatprep.subr.mxu0 0.0
    %239 = vmatpush1.xpose.msra.mxu0 0.0
    %240 = vmatprep.mubr.f32.mxu0 0.0
    %241 = vmatmul.mubr.f32.gmra.mrb[0].mxu0 %v168
    %v242 = vpop.f32.mrb[0].mxu0
    %v243 = vadd.f32 0.0, %v242
    %v244 = vpop.f32.mrb[0].mxu0
    %245 = vdwg.mxu0
    %v247 = vsel %vm166, %v143, 0
    %v250 = vsel %vm166, %v152, 0
    %v253 = vsel %vm166, %v153, 0
    %255 = vmatprep.subr.mxu0 0.0
    %256 = vmatpush1.xpose.msra.mxu0 %v250
    %257 = vmatprep.subr.mxu0 0.0
    %258 = vmatpush1.xpose.msra.mxu0 %v253
    %259 = vmatprep.subr.mxu0 0.0
    %260 = vmatpush1.xpose.msra.mxu0 0.0
    %261 = vmatprep.subr.mxu0 0.0
    %262 = vmatpush1.xpose.msra.mxu0 0.0
    %263 = vmatprep.subr.mxu0 0.0
    %264 = vmatpush1.xpose.msra.mxu0 0.0
    %265 = vmatprep.subr.mxu0 0.0
    %266 = vmatpush1.xpose.msra.mxu0 0.0
    %267 = vmatprep.subr.mxu0 0.0
    %268 = vmatpush1.xpose.msra.mxu0 0.0
    %269 = vmatprep.subr.mxu0 0.0
    %270 = vmatpush1.xpose.msra.mxu0 0.0
    %271 = vmatprep.subr.mxu0 0.0
    %272 = vmatpush1.xpose.msra.mxu0 0.0
    %273 = vmatprep.subr.mxu0 0.0
    %274 = vmatpush1.xpose.msra.mxu0 0.0
    %275 = vmatprep.subr.mxu0 0.0
    %276 = vmatpush1.xpose.msra.mxu0 0.0
    %277 = vmatprep.subr.mxu0 0.0
    %278 = vmatpush1.xpose.msra.mxu0 0.0
    %279 = vmatprep.subr.mxu0 0.0
    %280 = vmatpush1.xpose.msra.mxu0 0.0
    %281 = vmatprep.subr.mxu0 0.0
    %282 = vmatpush1.xpose.msra.mxu0 0.0
    %283 = vmatprep.subr.mxu0 0.0
    %284 = vmatpush1.xpose.msra.mxu0 0.0
    %285 = vmatprep.subr.mxu0 0.0
    %286 = vmatpush1.xpose.msra.mxu0 0.0
    %287 = vmatprep.subr.mxu0 0.0
    %288 = vmatpush1.xpose.msra.mxu0 0.0
    %289 = vmatprep.subr.mxu0 0.0
    %290 = vmatpush1.xpose.msra.mxu0 0.0
    %291 = vmatprep.subr.mxu0 0.0
    %292 = vmatpush1.xpose.msra.mxu0 0.0
    %293 = vmatprep.subr.mxu0 0.0
    %294 = vmatpush1.xpose.msra.mxu0 0.0
    %295 = vmatprep.subr.mxu0 0.0
    %296 = vmatpush1.xpose.msra.mxu0 0.0
    %297 = vmatprep.subr.mxu0 0.0
    %298 = vmatpush1.xpose.msra.mxu0 0.0
    %299 = vmatprep.subr.mxu0 0.0
    %300 = vmatpush1.xpose.msra.mxu0 0.0
    %301 = vmatprep.subr.mxu0 0.0
    %302 = vmatpush1.xpose.msra.mxu0 0.0
    %303 = vmatprep.subr.mxu0 0.0
    %304 = vmatpush1.xpose.msra.mxu0 0.0
    %305 = vmatprep.subr.mxu0 0.0
    %306 = vmatpush1.xpose.msra.mxu0 0.0
    %307 = vmatprep.subr.mxu0 0.0
    %308 = vmatpush1.xpose.msra.mxu0 0.0
    %309 = vmatprep.subr.mxu0 0.0
    %310 = vmatpush1.xpose.msra.mxu0 0.0
    %311 = vmatprep.subr.mxu0 0.0
    %312 = vmatpush1.xpose.msra.mxu0 0.0
    %313 = vmatprep.subr.mxu0 0.0
    %314 = vmatpush1.xpose.msra.mxu0 0.0
    %315 = vmatprep.subr.mxu0 0.0
    %316 = vmatpush1.xpose.msra.mxu0 0.0
    %317 = vmatprep.subr.mxu0 0.0
    %318 = vmatpush1.xpose.msra.mxu0 0.0
    %319 = vmatprep.mubr.f32.mxu0 0.0
    %320 = vmatmul.mubr.f32.gmra.mrb[0].mxu0 %v247
    %v321 = vpop.f32.mrb[0].mxu0
    %v322 = vadd.f32 0.0, %v321
    %v323 = vpop.f32.mrb[0].mxu0
    %324 = vdwg.mxu0
    %v326 = vsel %vm166, %v144, 0
    %v329 = vsel %vm166, %v154, 0
    %v332 = vsel %vm166, %v155, 0
    %334 = vmatprep.subr.mxu0 0.0
    %335 = vmatpush1.xpose.msra.mxu0 %v329
    %336 = vmatprep.subr.mxu0 0.0
    %337 = vmatpush1.xpose.msra.mxu0 %v332
    %338 = vmatprep.subr.mxu0 0.0
    %339 = vmatpush1.xpose.msra.mxu0 0.0
    %340 = vmatprep.subr.mxu0 0.0
    %341 = vmatpush1.xpose.msra.mxu0 0.0
    %342 = vmatprep.subr.mxu0 0.0
    %343 = vmatpush1.xpose.msra.mxu0 0.0
    %344 = vmatprep.subr.mxu0 0.0
    %345 = vmatpush1.xpose.msra.mxu0 0.0
    %346 = vmatprep.subr.mxu0 0.0
    %347 = vmatpush1.xpose.msra.mxu0 0.0
    %348 = vmatprep.subr.mxu0 0.0
    %349 = vmatpush1.xpose.msra.mxu0 0.0
    %350 = vmatprep.subr.mxu0 0.0
    %351 = vmatpush1.xpose.msra.mxu0 0.0
    %352 = vmatprep.subr.mxu0 0.0
    %353 = vmatpush1.xpose.msra.mxu0 0.0
    %354 = vmatprep.subr.mxu0 0.0
    %355 = vmatpush1.xpose.msra.mxu0 0.0
    %356 = vmatprep.subr.mxu0 0.0
    %357 = vmatpush1.xpose.msra.mxu0 0.0
    %358 = vmatprep.subr.mxu0 0.0
    %359 = vmatpush1.xpose.msra.mxu0 0.0
    %360 = vmatprep.subr.mxu0 0.0
    %361 = vmatpush1.xpose.msra.mxu0 0.0
    %362 = vmatprep.subr.mxu0 0.0
    %363 = vmatpush1.xpose.msra.mxu0 0.0
    %364 = vmatprep.subr.mxu0 0.0
    %365 = vmatpush1.xpose.msra.mxu0 0.0
    %366 = vmatprep.subr.mxu0 0.0
    %367 = vmatpush1.xpose.msra.mxu0 0.0
    %368 = vmatprep.subr.mxu0 0.0
    %369 = vmatpush1.xpose.msra.mxu0 0.0
    %370 = vmatprep.subr.mxu0 0.0
    %371 = vmatpush1.xpose.msra.mxu0 0.0
    %372 = vmatprep.subr.mxu0 0.0
    %373 = vmatpush1.xpose.msra.mxu0 0.0
    %374 = vmatprep.subr.mxu0 0.0
    %375 = vmatpush1.xpose.msra.mxu0 0.0
    %376 = vmatprep.subr.mxu0 0.0
    %377 = vmatpush1.xpose.msra.mxu0 0.0
    %378 = vmatprep.subr.mxu0 0.0
    %379 = vmatpush1.xpose.msra.mxu0 0.0
    %380 = vmatprep.subr.mxu0 0.0
    %381 = vmatpush1.xpose.msra.mxu0 0.0
    %382 = vmatprep.subr.mxu0 0.0
    %383 = vmatpush1.xpose.msra.mxu0 0.0
    %384 = vmatprep.subr.mxu0 0.0
    %385 = vmatpush1.xpose.msra.mxu0 0.0
    %386 = vmatprep.subr.mxu0 0.0
    %387 = vmatpush1.xpose.msra.mxu0 0.0
    %388 = vmatprep.subr.mxu0 0.0
    %389 = vmatpush1.xpose.msra.mxu0 0.0
    %390 = vmatprep.subr.mxu0 0.0
    %391 = vmatpush1.xpose.msra.mxu0 0.0
    %392 = vmatprep.subr.mxu0 0.0
    %393 = vmatpush1.xpose.msra.mxu0 0.0
    %394 = vmatprep.subr.mxu0 0.0
    %395 = vmatpush1.xpose.msra.mxu0 0.0
    %396 = vmatprep.subr.mxu0 0.0
    %397 = vmatpush1.xpose.msra.mxu0 0.0
    %398 = vmatprep.mubr.f32.mxu0 0.0
    %399 = vmatmul.mubr.f32.gmra.mrb[0].mxu0 %v326
    %v400 = vpop.f32.mrb[0].mxu0
    %v401 = vadd.f32 0.0, %v400
    %v402 = vpop.f32.mrb[0].mxu0
    %403 = vdwg.mxu0
    %v405 = vsel %vm166, %v145, 0
    %v408 = vsel %vm166, %v156, 0
    %v411 = vsel %vm166, %v157, 0
    %413 = vmatprep.subr.mxu0 0.0
    %414 = vmatpush1.xpose.msra.mxu0 %v408
    %415 = vmatprep.subr.mxu0 0.0
    %416 = vmatpush1.xpose.msra.mxu0 %v411
    %417 = vmatprep.subr.mxu0 0.0
    %418 = vmatpush1.xpose.msra.mxu0 0.0
    %419 = vmatprep.subr.mxu0 0.0
    %420 = vmatpush1.xpose.msra.mxu0 0.0
    %421 = vmatprep.subr.mxu0 0.0
    %422 = vmatpush1.xpose.msra.mxu0 0.0
    %423 = vmatprep.subr.mxu0 0.0
    %424 = vmatpush1.xpose.msra.mxu0 0.0
    %425 = vmatprep.subr.mxu0 0.0
    %426 = vmatpush1.xpose.msra.mxu0 0.0
    %427 = vmatprep.subr.mxu0 0.0
    %428 = vmatpush1.xpose.msra.mxu0 0.0
    %429 = vmatprep.subr.mxu0 0.0
    %430 = vmatpush1.xpose.msra.mxu0 0.0
    %431 = vmatprep.subr.mxu0 0.0
    %432 = vmatpush1.xpose.msra.mxu0 0.0
    %433 = vmatprep.subr.mxu0 0.0
    %434 = vmatpush1.xpose.msra.mxu0 0.0
    %435 = vmatprep.subr.mxu0 0.0
    %436 = vmatpush1.xpose.msra.mxu0 0.0
    %437 = vmatprep.subr.mxu0 0.0
    %438 = vmatpush1.xpose.msra.mxu0 0.0
    %439 = vmatprep.subr.mxu0 0.0
    %440 = vmatpush1.xpose.msra.mxu0 0.0
    %441 = vmatprep.subr.mxu0 0.0
    %442 = vmatpush1.xpose.msra.mxu0 0.0
    %443 = vmatprep.subr.mxu0 0.0
    %444 = vmatpush1.xpose.msra.mxu0 0.0
    %445 = vmatprep.subr.mxu0 0.0
    %446 = vmatpush1.xpose.msra.mxu0 0.0
    %447 = vmatprep.subr.mxu0 0.0
    %448 = vmatpush1.xpose.msra.mxu0 0.0
    %449 = vmatprep.subr.mxu0 0.0
    %450 = vmatpush1.xpose.msra.mxu0 0.0
    %451 = vmatprep.subr.mxu0 0.0
    %452 = vmatpush1.xpose.msra.mxu0 0.0
    %453 = vmatprep.subr.mxu0 0.0
    %454 = vmatpush1.xpose.msra.mxu0 0.0
    %455 = vmatprep.subr.mxu0 0.0
    %456 = vmatpush1.xpose.msra.mxu0 0.0
    %457 = vmatprep.subr.mxu0 0.0
    %458 = vmatpush1.xpose.msra.mxu0 0.0
    %459 = vmatprep.subr.mxu0 0.0
    %460 = vmatpush1.xpose.msra.mxu0 0.0
    %461 = vmatprep.subr.mxu0 0.0
    %462 = vmatpush1.xpose.msra.mxu0 0.0
    %463 = vmatprep.subr.mxu0 0.0
    %464 = vmatpush1.xpose.msra.mxu0 0.0
    %465 = vmatprep.subr.mxu0 0.0
    %466 = vmatpush1.xpose.msra.mxu0 0.0
    %467 = vmatprep.subr.mxu0 0.0
    %468 = vmatpush1.xpose.msra.mxu0 0.0
    %469 = vmatprep.subr.mxu0 0.0
    %470 = vmatpush1.xpose.msra.mxu0 0.0
    %471 = vmatprep.subr.mxu0 0.0
    %472 = vmatpush1.xpose.msra.mxu0 0.0
    %473 = vmatprep.subr.mxu0 0.0
    %474 = vmatpush1.xpose.msra.mxu0 0.0
    %475 = vmatprep.subr.mxu0 0.0
    %476 = vmatpush1.xpose.msra.mxu0 0.0
    %477 = vmatprep.mubr.f32.mxu0 0.0
    %478 = vmatmul.mubr.f32.gmra.mrb[0].mxu0 %v405
    %v479 = vpop.f32.mrb[0].mxu0
    %v480 = vadd.f32 0.0, %v479
    %v481 = vpop.f32.mrb[0].mxu0
    %482 = vdwg.mxu0
    %v484 = vsel %vm166, %v146, 0
    %v487 = vsel %vm166, %v158, 0
    %v490 = vsel %vm166, %v159, 0
    %492 = vmatprep.subr.mxu0 0.0
    %493 = vmatpush1.xpose.msra.mxu0 %v487
    %494 = vmatprep.subr.mxu0 0.0
    %495 = vmatpush1.xpose.msra.mxu0 %v490
    %496 = vmatprep.subr.mxu0 0.0
    %497 = vmatpush1.xpose.msra.mxu0 0.0
    %498 = vmatprep.subr.mxu0 0.0
    %499 = vmatpush1.xpose.msra.mxu0 0.0
    %500 = vmatprep.subr.mxu0 0.0
    %501 = vmatpush1.xpose.msra.mxu0 0.0
    %502 = vmatprep.subr.mxu0 0.0
    %503 = vmatpush1.xpose.msra.mxu0 0.0
    %504 = vmatprep.subr.mxu0 0.0
    %505 = vmatpush1.xpose.msra.mxu0 0.0
    %506 = vmatprep.subr.mxu0 0.0
    %507 = vmatpush1.xpose.msra.mxu0 0.0
    %508 = vmatprep.subr.mxu0 0.0
    %509 = vmatpush1.xpose.msra.mxu0 0.0
    %510 = vmatprep.subr.mxu0 0.0
    %511 = vmatpush1.xpose.msra.mxu0 0.0
    %512 = vmatprep.subr.mxu0 0.0
    %513 = vmatpush1.xpose.msra.mxu0 0.0
    %514 = vmatprep.subr.mxu0 0.0
    %515 = vmatpush1.xpose.msra.mxu0 0.0
    %516 = vmatprep.subr.mxu0 0.0
    %517 = vmatpush1.xpose.msra.mxu0 0.0
    %518 = vmatprep.subr.mxu0 0.0
    %519 = vmatpush1.xpose.msra.mxu0 0.0
    %520 = vmatprep.subr.mxu0 0.0
    %521 = vmatpush1.xpose.msra.mxu0 0.0
    %522 = vmatprep.subr.mxu0 0.0
    %523 = vmatpush1.xpose.msra.mxu0 0.0
    %524 = vmatprep.subr.mxu0 0.0
    %525 = vmatpush1.xpose.msra.mxu0 0.0
    %526 = vmatprep.subr.mxu0 0.0
    %527 = vmatpush1.xpose.msra.mxu0 0.0
    %528 = vmatprep.subr.mxu0 0.0
    %529 = vmatpush1.xpose.msra.mxu0 0.0
    %530 = vmatprep.subr.mxu0 0.0
    %531 = vmatpush1.xpose.msra.mxu0 0.0
    %532 = vmatprep.subr.mxu0 0.0
    %533 = vmatpush1.xpose.msra.mxu0 0.0
    %534 = vmatprep.subr.mxu0 0.0
    %535 = vmatpush1.xpose.msra.mxu0 0.0
    %536 = vmatprep.subr.mxu0 0.0
    %537 = vmatpush1.xpose.msra.mxu0 0.0
    %538 = vmatprep.subr.mxu0 0.0
    %539 = vmatpush1.xpose.msra.mxu0 0.0
    %540 = vmatprep.subr.mxu0 0.0
    %541 = vmatpush1.xpose.msra.mxu0 0.0
    %542 = vmatprep.subr.mxu0 0.0
    %543 = vmatpush1.xpose.msra.mxu0 0.0
    %544 = vmatprep.subr.mxu0 0.0
    %545 = vmatpush1.xpose.msra.mxu0 0.0
    %546 = vmatprep.subr.mxu0 0.0
    %547 = vmatpush1.xpose.msra.mxu0 0.0
    %548 = vmatprep.subr.mxu0 0.0
    %549 = vmatpush1.xpose.msra.mxu0 0.0
    %550 = vmatprep.subr.mxu0 0.0
    %551 = vmatpush1.xpose.msra.mxu0 0.0
    %552 = vmatprep.subr.mxu0 0.0
    %553 = vmatpush1.xpose.msra.mxu0 0.0
    %554 = vmatprep.subr.mxu0 0.0
    %555 = vmatpush1.xpose.msra.mxu0 0.0
    %556 = vmatprep.mubr.f32.mxu0 0.0
    %557 = vmatmul.mubr.f32.gmra.mrb[0].mxu0 %v484
    %v558 = vpop.f32.mrb[0].mxu0
    %v559 = vadd.f32 0.0, %v558
    %v560 = vpop.f32.mrb[0].mxu0
    %561 = vdwg.mxu0
    %v563 = vsel %vm166, %v147, 0
    %v566 = vsel %vm166, %v160, 0
    %v569 = vsel %vm166, %v161, 0
    %571 = vmatprep.subr.mxu0 0.0
    %572 = vmatpush1.xpose.msra.mxu0 %v566
    %573 = vmatprep.subr.mxu0 0.0
    %574 = vmatpush1.xpose.msra.mxu0 %v569
    %575 = vmatprep.subr.mxu0 0.0
    %576 = vmatpush1.xpose.msra.mxu0 0.0
    %577 = vmatprep.subr.mxu0 0.0
    %578 = vmatpush1.xpose.msra.mxu0 0.0
    %579 = vmatprep.subr.mxu0 0.0
    %580 = vmatpush1.xpose.msra.mxu0 0.0
    %581 = vmatprep.subr.mxu0 0.0
    %582 = vmatpush1.xpose.msra.mxu0 0.0
    %583 = vmatprep.subr.mxu0 0.0
    %584 = vmatpush1.xpose.msra.mxu0 0.0
    %585 = vmatprep.subr.mxu0 0.0
    %586 = vmatpush1.xpose.msra.mxu0 0.0
    %587 = vmatprep.subr.mxu0 0.0
    %588 = vmatpush1.xpose.msra.mxu0 0.0
    %589 = vmatprep.subr.mxu0 0.0
    %590 = vmatpush1.xpose.msra.mxu0 0.0
    %591 = vmatprep.subr.mxu0 0.0
    %592 = vmatpush1.xpose.msra.mxu0 0.0
    %593 = vmatprep.subr.mxu0 0.0
    %594 = vmatpush1.xpose.msra.mxu0 0.0
    %595 = vmatprep.subr.mxu0 0.0
    %596 = vmatpush1.xpose.msra.mxu0 0.0
    %597 = vmatprep.subr.mxu0 0.0
    %598 = vmatpush1.xpose.msra.mxu0 0.0
    %599 = vmatprep.subr.mxu0 0.0
    %600 = vmatpush1.xpose.msra.mxu0 0.0
    %601 = vmatprep.subr.mxu0 0.0
    %602 = vmatpush1.xpose.msra.mxu0 0.0
    %603 = vmatprep.subr.mxu0 0.0
    %604 = vmatpush1.xpose.msra.mxu0 0.0
    %605 = vmatprep.subr.mxu0 0.0
    %606 = vmatpush1.xpose.msra.mxu0 0.0
    %607 = vmatprep.subr.mxu0 0.0
    %608 = vmatpush1.xpose.msra.mxu0 0.0
    %609 = vmatprep.subr.mxu0 0.0
    %610 = vmatpush1.xpose.msra.mxu0 0.0
    %611 = vmatprep.subr.mxu0 0.0
    %612 = vmatpush1.xpose.msra.mxu0 0.0
    %613 = vmatprep.subr.mxu0 0.0
    %614 = vmatpush1.xpose.msra.mxu0 0.0
    %615 = vmatprep.subr.mxu0 0.0
    %616 = vmatpush1.xpose.msra.mxu0 0.0
    %617 = vmatprep.subr.mxu0 0.0
    %618 = vmatpush1.xpose.msra.mxu0 0.0
    %619 = vmatprep.subr.mxu0 0.0
    %620 = vmatpush1.xpose.msra.mxu0 0.0
    %621 = vmatprep.subr.mxu0 0.0
    %622 = vmatpush1.xpose.msra.mxu0 0.0
    %623 = vmatprep.subr.mxu0 0.0
    %624 = vmatpush1.xpose.msra.mxu0 0.0
    %625 = vmatprep.subr.mxu0 0.0
    %626 = vmatpush1.xpose.msra.mxu0 0.0
    %627 = vmatprep.subr.mxu0 0.0
    %628 = vmatpush1.xpose.msra.mxu0 0.0
    %629 = vmatprep.subr.mxu0 0.0
    %630 = vmatpush1.xpose.msra.mxu0 0.0
    %631 = vmatprep.subr.mxu0 0.0
    %632 = vmatpush1.xpose.msra.mxu0 0.0
    %633 = vmatprep.subr.mxu0 0.0
    %634 = vmatpush1.xpose.msra.mxu0 0.0
    %635 = vmatprep.mubr.f32.mxu0 0.0
    %636 = vmatmul.mubr.f32.gmra.mrb[0].mxu0 %v563
    %v637 = vpop.f32.mrb[0].mxu0
    %v638 = vadd.f32 0.0, %v637
    %v639 = vpop.f32.mrb[0].mxu0
    %640 = vdwg.mxu0
    %v642 = vsel %vm166, %v148, 0
    %v645 = vsel %vm166, %v162, 0
    %v648 = vsel %vm166, %v163, 0
    %650 = vmatprep.subr.mxu0 0.0
    %651 = vmatpush1.xpose.msra.mxu0 %v645
    %652 = vmatprep.subr.mxu0 0.0
    %653 = vmatpush1.xpose.msra.mxu0 %v648
    %654 = vmatprep.subr.mxu0 0.0
    %655 = vmatpush1.xpose.msra.mxu0 0.0
    %656 = vmatprep.subr.mxu0 0.0
    %657 = vmatpush1.xpose.msra.mxu0 0.0
    %658 = vmatprep.subr.mxu0 0.0
    %659 = vmatpush1.xpose.msra.mxu0 0.0
    %660 = vmatprep.subr.mxu0 0.0
    %661 = vmatpush1.xpose.msra.mxu0 0.0
    %662 = vmatprep.subr.mxu0 0.0
    %663 = vmatpush1.xpose.msra.mxu0 0.0
    %664 = vmatprep.subr.mxu0 0.0
    %665 = vmatpush1.xpose.msra.mxu0 0.0
    %666 = vmatprep.subr.mxu0 0.0
    %667 = vmatpush1.xpose.msra.mxu0 0.0
    %668 = vmatprep.subr.mxu0 0.0
    %669 = vmatpush1.xpose.msra.mxu0 0.0
    %670 = vmatprep.subr.mxu0 0.0
    %671 = vmatpush1.xpose.msra.mxu0 0.0
    %672 = vmatprep.subr.mxu0 0.0
    %673 = vmatpush1.xpose.msra.mxu0 0.0
    %674 = vmatprep.subr.mxu0 0.0
    %675 = vmatpush1.xpose.msra.mxu0 0.0
    %676 = vmatprep.subr.mxu0 0.0
    %677 = vmatpush1.xpose.msra.mxu0 0.0
    %678 = vmatprep.subr.mxu0 0.0
    %679 = vmatpush1.xpose.msra.mxu0 0.0
    %680 = vmatprep.subr.mxu0 0.0
    %681 = vmatpush1.xpose.msra.mxu0 0.0
    %682 = vmatprep.subr.mxu0 0.0
    %683 = vmatpush1.xpose.msra.mxu0 0.0
    %684 = vmatprep.subr.mxu0 0.0
    %685 = vmatpush1.xpose.msra.mxu0 0.0
    %686 = vmatprep.subr.mxu0 0.0
    %687 = vmatpush1.xpose.msra.mxu0 0.0
    %688 = vmatprep.subr.mxu0 0.0
    %689 = vmatpush1.xpose.msra.mxu0 0.0
    %690 = vmatprep.subr.mxu0 0.0
    %691 = vmatpush1.xpose.msra.mxu0 0.0
    %692 = vmatprep.subr.mxu0 0.0
    %693 = vmatpush1.xpose.msra.mxu0 0.0
    %694 = vmatprep.subr.mxu0 0.0
    %695 = vmatpush1.xpose.msra.mxu0 0.0
    %696 = vmatprep.subr.mxu0 0.0
    %697 = vmatpush1.xpose.msra.mxu0 0.0
    %698 = vmatprep.subr.mxu0 0.0
    %699 = vmatpush1.xpose.msra.mxu0 0.0
    %700 = vmatprep.subr.mxu0 0.0
    %701 = vmatpush1.xpose.msra.mxu0 0.0
    %702 = vmatprep.subr.mxu0 0.0
    %703 = vmatpush1.xpose.msra.mxu0 0.0
    %704 = vmatprep.subr.mxu0 0.0
    %705 = vmatpush1.xpose.msra.mxu0 0.0
    %706 = vmatprep.subr.mxu0 0.0
    %707 = vmatpush1.xpose.msra.mxu0 0.0
    %708 = vmatprep.subr.mxu0 0.0
    %709 = vmatpush1.xpose.msra.mxu0 0.0
    %710 = vmatprep.subr.mxu0 0.0
    %711 = vmatpush1.xpose.msra.mxu0 0.0
    %712 = vmatprep.subr.mxu0 0.0
    %713 = vmatpush1.xpose.msra.mxu0 0.0
    %714 = vmatprep.mubr.f32.mxu0 0.0
    %715 = vmatmul.mubr.f32.gmra.mrb[0].mxu0 %v642
    %v716 = vpop.f32.mrb[0].mxu0
    %v717 = vadd.f32 0.0, %v716
    %v718 = vpop.f32.mrb[0].mxu0
    %719 = vdwg.mxu0
    %v721 = vsel %vm166, %v149, 0
    %v724 = vsel %vm166, %v164, 0
    %v727 = vsel %vm166, %v165, 0
    %729 = vmatprep.subr.mxu0 0.0
    %730 = vmatpush1.xpose.msra.mxu0 %v724
    %731 = vmatprep.subr.mxu0 0.0
    %732 = vmatpush1.xpose.msra.mxu0 %v727
    %733 = vmatprep.subr.mxu0 0.0
    %734 = vmatpush1.xpose.msra.mxu0 0.0
    %735 = vmatprep.subr.mxu0 0.0
    %736 = vmatpush1.xpose.msra.mxu0 0.0
    %737 = vmatprep.subr.mxu0 0.0
    %738 = vmatpush1.xpose.msra.mxu0 0.0
    %739 = vmatprep.subr.mxu0 0.0
    %740 = vmatpush1.xpose.msra.mxu0 0.0
    %741 = vmatprep.subr.mxu0 0.0
    %742 = vmatpush1.xpose.msra.mxu0 0.0
    %743 = vmatprep.subr.mxu0 0.0
    %744 = vmatpush1.xpose.msra.mxu0 0.0
    %745 = vmatprep.subr.mxu0 0.0
    %746 = vmatpush1.xpose.msra.mxu0 0.0
    %747 = vmatprep.subr.mxu0 0.0
    %748 = vmatpush1.xpose.msra.mxu0 0.0
    %749 = vmatprep.subr.mxu0 0.0
    %750 = vmatpush1.xpose.msra.mxu0 0.0
    %751 = vmatprep.subr.mxu0 0.0
    %752 = vmatpush1.xpose.msra.mxu0 0.0
    %753 = vmatprep.subr.mxu0 0.0
    %754 = vmatpush1.xpose.msra.mxu0 0.0
    %755 = vmatprep.subr.mxu0 0.0
    %756 = vmatpush1.xpose.msra.mxu0 0.0
    %757 = vmatprep.subr.mxu0 0.0
    %758 = vmatpush1.xpose.msra.mxu0 0.0
    %759 = vmatprep.subr.mxu0 0.0
    %760 = vmatpush1.xpose.msra.mxu0 0.0
    %761 = vmatprep.subr.mxu0 0.0
    %762 = vmatpush1.xpose.msra.mxu0 0.0
    %763 = vmatprep.subr.mxu0 0.0
    %764 = vmatpush1.xpose.msra.mxu0 0.0
    %765 = vmatprep.subr.mxu0 0.0
    %766 = vmatpush1.xpose.msra.mxu0 0.0
    %767 = vmatprep.subr.mxu0 0.0
    %768 = vmatpush1.xpose.msra.mxu0 0.0
    %769 = vmatprep.subr.mxu0 0.0
    %770 = vmatpush1.xpose.msra.mxu0 0.0
    %771 = vmatprep.subr.mxu0 0.0
    %772 = vmatpush1.xpose.msra.mxu0 0.0
    %773 = vmatprep.subr.mxu0 0.0
    %774 = vmatpush1.xpose.msra.mxu0 0.0
    %775 = vmatprep.subr.mxu0 0.0
    %776 = vmatpush1.xpose.msra.mxu0 0.0
    %777 = vmatprep.subr.mxu0 0.0
    %778 = vmatpush1.xpose.msra.mxu0 0.0
    %779 = vmatprep.subr.mxu0 0.0
    %780 = vmatpush1.xpose.msra.mxu0 0.0
    %781 = vmatprep.subr.mxu0 0.0
    %782 = vmatpush1.xpose.msra.mxu0 0.0
    %783 = vmatprep.subr.mxu0 0.0
    %784 = vmatpush1.xpose.msra.mxu0 0.0
    %785 = vmatprep.subr.mxu0 0.0
    %786 = vmatpush1.xpose.msra.mxu0 0.0
    %787 = vmatprep.subr.mxu0 0.0
    %788 = vmatpush1.xpose.msra.mxu0 0.0
    %789 = vmatprep.subr.mxu0 0.0
    %790 = vmatpush1.xpose.msra.mxu0 0.0
    %791 = vmatprep.subr.mxu0 0.0
    %792 = vmatpush1.xpose.msra.mxu0 0.0
    %793 = vmatprep.mubr.f32.mxu0 0.0
    %794 = vmatmul.mubr.f32.gmra.mrb[0].mxu0 %v721
    %v795 = vpop.f32.mrb[0].mxu0
    %v796 = vadd.f32 0.0, %v795
    %v797 = vpop.f32.mrb[0].mxu0
    %798 = vdwg.mxu0
    %v799 = vmul.f32 %v243, 14.285714
    %v800 = vmul.f32 %v322, 14.285714
    %v801 = vmul.f32 %v401, 14.285714
    %v802 = vmul.f32 %v480, 14.285714
    %v803 = vmul.f32 %v559, 14.285714
    %v804 = vmul.f32 %v638, 14.285714
    %v805 = vmul.f32 %v717, 14.285714
    %v806 = vmul.f32 %v796, 14.285714
    %v807 = vld [vmem:[#allocation2] sm:$0x1]
    %v808 = vld [vmem:[#allocation2 + $0x1] sm:$0x1]
    %v809 = vld [vmem:[#allocation2 + $0x2] sm:$0x1]
    %v810 = vld [vmem:[#allocation2 + $0x3] sm:$0x1]
    %v811 = vld [vmem:[#allocation2 + $0x4] sm:$0x1]
    %v812 = vld [vmem:[#allocation2 + $0x5] sm:$0x1]
    %v813 = vld [vmem:[#allocation2 + $0x6] sm:$0x1]
    %v814 = vld [vmem:[#allocation2 + $0x7] sm:$0x1]
    %vm815 = vcmask 122880
    %v816 = vsel %vm815, %v799, -inf
    %817 = vmax.xlane.f32.xlu0 %v816
    %v818 = vpop.xlane.xlu0 %817
    %v819 = vsel %vm815, %v800, -inf
    %820 = vmax.xlane.f32.xlu0 %v819
    %v821 = vpop.xlane.xlu0 %820
    %v822 = vsel %vm815, %v801, -inf
    %823 = vmax.xlane.f32.xlu0 %v822
    %v824 = vpop.xlane.xlu0 %823
    %v825 = vsel %vm815, %v802, -inf
    %826 = vmax.xlane.f32.xlu0 %v825
    %v827 = vpop.xlane.xlu0 %826
    %v828 = vsel %vm815, %v803, -inf
    %829 = vmax.xlane.f32.xlu0 %v828
    %v830 = vpop.xlane.xlu0 %829
    %v831 = vsel %vm815, %v804, -inf
    %832 = vmax.xlane.f32.xlu0 %v831
    %v833 = vpop.xlane.xlu0 %832
    %v834 = vsel %vm815, %v805, -inf
    %835 = vmax.xlane.f32.xlu0 %v834
    %v836 = vpop.xlane.xlu0 %835
    %v837 = vsel %vm815, %v806, -inf
    %838 = vmax.xlane.f32.xlu0 %v837
    %v839 = vpop.xlane.xlu0 %838
    %v840 = vmax.f32 %v807, %v818
    %v841 = vmax.f32 %v808, %v821
    %v842 = vmax.f32 %v809, %v824
    %v843 = vmax.f32 %v810, %v827
    %v844 = vmax.f32 %v811, %v830
    %v845 = vmax.f32 %v812, %v833
    %v846 = vmax.f32 %v813, %v836
    %v847 = vmax.f32 %v814, %v839
    %v848 = vsub.f32 %v807, %v840
    %v849 = vsub.f32 %v808, %v841
    %v850 = vsub.f32 %v809, %v842
    %v851 = vsub.f32 %v810, %v843
    %v852 = vsub.f32 %v811, %v844
    %v853 = vsub.f32 %v812, %v845
    %v854 = vsub.f32 %v813, %v846
    %v855 = vsub.f32 %v814, %v847
    %v856 = vmul.f32 %v848, 1.442695
    %v857 = vpow.pop %v856
    %v858 = vmul.f32 %v849, 1.442695
    %v859 = vpow.pop %v858
    %v860 = vmul.f32 %v850, 1.442695
    %v861 = vpow.pop %v860
    %v862 = vmul.f32 %v851, 1.442695
    %v863 = vpow.pop %v862
    %v864 = vmul.f32 %v852, 1.442695
    %v865 = vpow.pop %v864
    %v866 = vmul.f32 %v853, 1.442695
    %v867 = vpow.pop %v866
    %v868 = vmul.f32 %v854, 1.442695
    %v869 = vpow.pop %v868
    %v870 = vmul.f32 %v855, 1.442695
    %v871 = vpow.pop %v870
    %v872 = vld [vmem:[#allocation3] sm:$0x1]
    %v873 = vld [vmem:[#allocation3 + $0x1] sm:$0x1]
    %v874 = vld [vmem:[#allocation3 + $0x2] sm:$0x1]
    %v875 = vld [vmem:[#allocation3 + $0x3] sm:$0x1]
    %v876 = vld [vmem:[#allocation3 + $0x4] sm:$0x1]
    %v877 = vld [vmem:[#allocation3 + $0x5] sm:$0x1]
    %v878 = vld [vmem:[#allocation3 + $0x6] sm:$0x1]
    %v879 = vld [vmem:[#allocation3 + $0x7] sm:$0x1]
    %v880 = vmul.f32 %v857, %v872
    %v881 = vmul.f32 %v859, %v873
    %v882 = vmul.f32 %v861, %v874
    %v883 = vmul.f32 %v863, %v875
    %v884 = vmul.f32 %v865, %v876
    %v885 = vmul.f32 %v867, %v877
    %v886 = vmul.f32 %v869, %v878
    %v887 = vmul.f32 %v871, %v879
    %889 = vset.pattern.permute.xlu0 0
    %890 = vperm.xlu0 %889, %v840
    %v891 = vpop.permute.xlu0 %890
    %v893 = vlaneseq
    %v894 = vshrl.u32 %v893, 7
    %v895 = vsub.s32 0, %v894
    %v896 = vrot.slane %v891, %v895
    %898 = vset.pattern.permute.xlu0 0
    %899 = vperm.xlu0 %898, %v841
    %v900 = vpop.permute.xlu0 %899
    %v902 = vlaneseq
    %v903 = vshrl.u32 %v902, 7
    %v904 = vsub.s32 0, %v903
    %v905 = vrot.slane %v900, %v904
    %907 = vset.pattern.permute.xlu0 0
    %908 = vperm.xlu0 %907, %v842
    %v909 = vpop.permute.xlu0 %908
    %v911 = vlaneseq
    %v912 = vshrl.u32 %v911, 7
    %v913 = vsub.s32 0, %v912
    %v914 = vrot.slane %v909, %v913
    %916 = vset.pattern.permute.xlu0 0
    %917 = vperm.xlu0 %916, %v843
    %v918 = vpop.permute.xlu0 %917
    %v920 = vlaneseq
    %v921 = vshrl.u32 %v920, 7
    %v922 = vsub.s32 0, %v921
    %v923 = vrot.slane %v918, %v922
    %925 = vset.pattern.permute.xlu0 0
    %926 = vperm.xlu0 %925, %v844
    %v927 = vpop.permute.xlu0 %926
    %v929 = vlaneseq
    %v930 = vshrl.u32 %v929, 7
    %v931 = vsub.s32 0, %v930
    %v932 = vrot.slane %v927, %v931
    %934 = vset.pattern.permute.xlu0 0
    %935 = vperm.xlu0 %934, %v845
    %v936 = vpop.permute.xlu0 %935
    %v938 = vlaneseq
    %v939 = vshrl.u32 %v938, 7
    %v940 = vsub.s32 0, %v939
    %v941 = vrot.slane %v936, %v940
    %943 = vset.pattern.permute.xlu0 0
    %944 = vperm.xlu0 %943, %v846
    %v945 = vpop.permute.xlu0 %944
    %v947 = vlaneseq
    %v948 = vshrl.u32 %v947, 7
    %v949 = vsub.s32 0, %v948
    %v950 = vrot.slane %v945, %v949
    %952 = vset.pattern.permute.xlu0 0
    %953 = vperm.xlu0 %952, %v847
    %v954 = vpop.permute.xlu0 %953
    %v956 = vlaneseq
    %v957 = vshrl.u32 %v956, 7
    %v958 = vsub.s32 0, %v957
    %v959 = vrot.slane %v954, %v958
    %v960 = vsub.f32 %v799, %v896
    %v961 = vsub.f32 %v800, %v905
    %v962 = vsub.f32 %v801, %v914
    %v963 = vsub.f32 %v802, %v923
    %v964 = vsub.f32 %v803, %v932
    %v965 = vsub.f32 %v804, %v941
    %v966 = vsub.f32 %v805, %v950
    %v967 = vsub.f32 %v806, %v959
    %v968 = vmul.f32 %v960, 1.442695
    %v969 = vpow.pop %v968
    %v970 = vmul.f32 %v961, 1.442695
    %v971 = vpow.pop %v970
    %v972 = vmul.f32 %v962, 1.442695
    %v973 = vpow.pop %v972
    %v974 = vmul.f32 %v963, 1.442695
    %v975 = vpow.pop %v974
    %v976 = vmul.f32 %v964, 1.442695
    %v977 = vpow.pop %v976
    %v978 = vmul.f32 %v965, 1.442695
    %v979 = vpow.pop %v978
    %v980 = vmul.f32 %v966, 1.442695
    %v981 = vpow.pop %v980
    %v982 = vmul.f32 %v967, 1.442695
    %v983 = vpow.pop %v982
    %v984 = vsel %vm815, %v969, 0.0
    %985 = vadd.xlane.f32.xlu0 %v984
    %v986 = vpop.xlane.xlu0 %985
    %v987 = vsel %vm815, %v971, 0.0
    %988 = vadd.xlane.f32.xlu0 %v987
    %v989 = vpop.xlane.xlu0 %988
    %v990 = vsel %vm815, %v973, 0.0
    %991 = vadd.xlane.f32.xlu0 %v990
    %v992 = vpop.xlane.xlu0 %991
    %v993 = vsel %vm815, %v975, 0.0
    %994 = vadd.xlane.f32.xlu0 %v993
    %v995 = vpop.xlane.xlu0 %994
    %v996 = vsel %vm815, %v977, 0.0
    %997 = vadd.xlane.f32.xlu0 %v996
    %v998 = vpop.xlane.xlu0 %997
    %v999 = vsel %vm815, %v979, 0.0
    %1000 = vadd.xlane.f32.xlu0 %v999
    %v1001 = vpop.xlane.xlu0 %1000
    %v1002 = vsel %vm815, %v981, 0.0
    %1003 = vadd.xlane.f32.xlu0 %v1002
    %v1004 = vpop.xlane.xlu0 %1003
    %v1005 = vsel %vm815, %v983, 0.0
    %1006 = vadd.xlane.f32.xlu0 %v1005
    %v1007 = vpop.xlane.xlu0 %1006
    %v1008 = vadd.f32 %v880, %v986
    %v1009 = vadd.f32 %v881, %v989
    %v1010 = vadd.f32 %v882, %v992
    %v1011 = vadd.f32 %v883, %v995
    %v1012 = vadd.f32 %v884, %v998
    %v1013 = vadd.f32 %v885, %v1001
    %v1014 = vadd.f32 %v886, %v1004
    %v1015 = vadd.f32 %v887, %v1007
    %vm1016 = vcmask 0
    %1017 = vst.msk [vmem:[#allocation3] sm:$0x1] %vm1016, %v1008
    %1018 = vst.msk [vmem:[#allocation3 + $0x1] sm:$0x1] %vm1016, %v1009
    %1019 = vst.msk [vmem:[#allocation3 + $0x2] sm:$0x1] %vm1016, %v1010
    %1020 = vst.msk [vmem:[#allocation3 + $0x3] sm:$0x1] %vm1016, %v1011
    %1021 = vst.msk [vmem:[#allocation3 + $0x4] sm:$0x1] %vm1016, %v1012
    %1022 = vst.msk [vmem:[#allocation3 + $0x5] sm:$0x1] %vm1016, %v1013
    %1023 = vst.msk [vmem:[#allocation3 + $0x6] sm:$0x1] %vm1016, %v1014
    %1024 = vst.msk [vmem:[#allocation3 + $0x7] sm:$0x1] %vm1016, %v1015
    %1025 = vst.msk [vmem:[#allocation2] sm:$0x1] %vm1016, %v840
    %1026 = vst.msk [vmem:[#allocation2 + $0x1] sm:$0x1] %vm1016, %v841
    %1027 = vst.msk [vmem:[#allocation2 + $0x2] sm:$0x1] %vm1016, %v842
    %1028 = vst.msk [vmem:[#allocation2 + $0x3] sm:$0x1] %vm1016, %v843
    %1029 = vst.msk [vmem:[#allocation2 + $0x4] sm:$0x1] %vm1016, %v844
    %1030 = vst.msk [vmem:[#allocation2 + $0x5] sm:$0x1] %vm1016, %v845
    %1031 = vst.msk [vmem:[#allocation2 + $0x6] sm:$0x1] %vm1016, %v846
    %1032 = vst.msk [vmem:[#allocation2 + $0x7] sm:$0x1] %vm1016, %v847
    // Predicated region
    $region30: #{tpu_custom_call.1} parent=1 // pred_check
      %p1033 = pneg %p56
    $region31: #{tpu_custom_call.1} parent=1 // pred_check_branch
      %1035 = sbr.rel (%p1033) target = $region33
    $region32: #{tpu_custom_call.1} parent=1 // pred_region
      %v1036 = vld [vmem:[#allocation2] sm:$0x1]
      %v1037 = vld [vmem:[#allocation2 + $0x1] sm:$0x1]
      %v1038 = vld [vmem:[#allocation2 + $0x2] sm:$0x1]
      %v1039 = vld [vmem:[#allocation2 + $0x3] sm:$0x1]
      %v1040 = vld [vmem:[#allocation2 + $0x4] sm:$0x1]
      %v1041 = vld [vmem:[#allocation2 + $0x5] sm:$0x1]
      %v1042 = vld [vmem:[#allocation2 + $0x6] sm:$0x1]
      %v1043 = vld [vmem:[#allocation2 + $0x7] sm:$0x1]
      %v1044 = vld [vmem:[#allocation3] sm:$0x1]
      %v1045 = vld [vmem:[#allocation3 + $0x1] sm:$0x1]
      %v1046 = vld [vmem:[#allocation3 + $0x2] sm:$0x1]
      %v1047 = vld [vmem:[#allocation3 + $0x3] sm:$0x1]
      %v1048 = vld [vmem:[#allocation3 + $0x4] sm:$0x1]
      %v1049 = vld [vmem:[#allocation3 + $0x5] sm:$0x1]
      %v1050 = vld [vmem:[#allocation3 + $0x6] sm:$0x1]
      %v1051 = vld [vmem:[#allocation3 + $0x7] sm:$0x1]
      %v1052 = vlog2.pop %v1044
      %v1053 = vmul.f32 %v1052, 0.6931472
      %v1054 = vlog2.pop %v1045
      %v1055 = vmul.f32 %v1054, 0.6931472
      %v1056 = vlog2.pop %v1046
      %v1057 = vmul.f32 %v1056, 0.6931472
      %v1058 = vlog2.pop %v1047
      %v1059 = vmul.f32 %v1058, 0.6931472
      %v1060 = vlog2.pop %v1048
      %v1061 = vmul.f32 %v1060, 0.6931472
      %v1062 = vlog2.pop %v1049
      %v1063 = vmul.f32 %v1062, 0.6931472
      %v1064 = vlog2.pop %v1050
      %v1065 = vmul.f32 %v1064, 0.6931472
      %v1066 = vlog2.pop %v1051
      %v1067 = vmul.f32 %v1066, 0.6931472
      %v1068 = vadd.f32 %v1036, %v1053
      %v1069 = vadd.f32 %v1037, %v1055
      %v1070 = vadd.f32 %v1038, %v1057
      %v1071 = vadd.f32 %v1039, %v1059
      %v1072 = vadd.f32 %v1040, %v1061
      %v1073 = vadd.f32 %v1041, %v1063
      %v1074 = vadd.f32 %v1042, %v1065
      %v1075 = vadd.f32 %v1043, %v1067
      %v1076 = vld [vmem:[#allocation4] sm:$0x1]
      %v1077 = vld [vmem:[#allocation4 + $0x1] sm:$0x1]
      %v1078 = vld [vmem:[#allocation4 + $0x2] sm:$0x1]
      %v1079 = vld [vmem:[#allocation4 + $0x3] sm:$0x1]
      %v1080 = vld [vmem:[#allocation4 + $0x4] sm:$0x1]
      %v1081 = vld [vmem:[#allocation4 + $0x5] sm:$0x1]
      %v1082 = vld [vmem:[#allocation4 + $0x6] sm:$0x1]
      %v1083 = vld [vmem:[#allocation4 + $0x7] sm:$0x1]
      %v1084 = vsub.f32 %v1068, %v1076
      %v1085 = vsub.f32 %v1069, %v1077
      %v1086 = vsub.f32 %v1070, %v1078
      %v1087 = vsub.f32 %v1071, %v1079
      %v1088 = vsub.f32 %v1072, %v1080
      %v1089 = vsub.f32 %v1073, %v1081
      %v1090 = vsub.f32 %v1074, %v1082
      %v1091 = vsub.f32 %v1075, %v1083
      %1093 = vset.pattern.permute.xlu0 0
      %1094 = vperm.xlu0 %1093, %v1084
      %v1095 = vpop.permute.xlu0 %1094
      %v1097 = vlaneseq
      %v1098 = vshrl.u32 %v1097, 7
      %v1099 = vsub.s32 0, %v1098
      %v1100 = vrot.slane %v1095, %v1099
      %1102 = vset.pattern.permute.xlu0 0
      %1103 = vperm.xlu0 %1102, %v1085
      %v1104 = vpop.permute.xlu0 %1103
      %v1106 = vlaneseq
      %v1107 = vshrl.u32 %v1106, 7
      %v1108 = vsub.s32 0, %v1107
      %v1109 = vrot.slane %v1104, %v1108
      %1111 = vset.pattern.permute.xlu0 0
      %1112 = vperm.xlu0 %1111, %v1086
      %v1113 = vpop.permute.xlu0 %1112
      %v1115 = vlaneseq
      %v1116 = vshrl.u32 %v1115, 7
      %v1117 = vsub.s32 0, %v1116
      %v1118 = vrot.slane %v1113, %v1117
      %1120 = vset.pattern.permute.xlu0 0
      %1121 = vperm.xlu0 %1120, %v1087
      %v1122 = vpop.permute.xlu0 %1121
      %v1124 = vlaneseq
      %v1125 = vshrl.u32 %v1124, 7
      %v1126 = vsub.s32 0, %v1125
      %v1127 = vrot.slane %v1122, %v1126
      %1129 = vset.pattern.permute.xlu0 0
      %1130 = vperm.xlu0 %1129, %v1088
      %v1131 = vpop.permute.xlu0 %1130
      %v1133 = vlaneseq
      %v1134 = vshrl.u32 %v1133, 7
      %v1135 = vsub.s32 0, %v1134
      %v1136 = vrot.slane %v1131, %v1135
      %1138 = vset.pattern.permute.xlu0 0
      %1139 = vperm.xlu0 %1138, %v1089
      %v1140 = vpop.permute.xlu0 %1139
      %v1142 = vlaneseq
      %v1143 = vshrl.u32 %v1142, 7
      %v1144 = vsub.s32 0, %v1143
      %v1145 = vrot.slane %v1140, %v1144
      %1147 = vset.pattern.permute.xlu0 0
      %1148 = vperm.xlu0 %1147, %v1090
      %v1149 = vpop.permute.xlu0 %1148
      %v1151 = vlaneseq
      %v1152 = vshrl.u32 %v1151, 7
      %v1153 = vsub.s32 0, %v1152
      %v1154 = vrot.slane %v1149, %v1153
      %1156 = vset.pattern.permute.xlu0 0
      %1157 = vperm.xlu0 %1156, %v1091
      %v1158 = vpop.permute.xlu0 %1157
      %v1160 = vlaneseq
      %v1161 = vshrl.u32 %v1160, 7
      %v1162 = vsub.s32 0, %v1161
      %v1163 = vrot.slane %v1158, %v1162
      %1164 = vst [vmem:[#allocation11] sm:$0x1] %v1100
      %1165 = vst [vmem:[#allocation11 + $0x1] sm:$0x1] %v1109
      %1166 = vst [vmem:[#allocation11 + $0x2] sm:$0x1] %v1118
      %1167 = vst [vmem:[#allocation11 + $0x3] sm:$0x1] %v1127
      %1168 = vst [vmem:[#allocation11 + $0x4] sm:$0x1] %v1136
      %1169 = vst [vmem:[#allocation11 + $0x5] sm:$0x1] %v1145
      %1170 = vst [vmem:[#allocation11 + $0x6] sm:$0x1] %v1154
      %1171 = vst [vmem:[#allocation11 + $0x7] sm:$0x1] %v1163
    $region33: #{tpu_custom_call.1} parent=1 // pred_fallthru
      _
    // Predicated region
    $region34: #{tpu_custom_call.1} parent=1 // pred_check
      _
    $region35: #{tpu_custom_call.1} parent=1 // pred_check_branch
      %1173 = sbr.rel (0) target = $region37
    $region36: #{tpu_custom_call.1} parent=1 // pred_region
      %s1175 = ssub.s32 128, 128
      %1176 = vsyncadd [#allocation7], %s1175
      %s1177 = sshll.u32 [#allocation11], 4
      %s1178 = int_to_ptr.vmem [resolvable:$true] %s1177
      %1183 = dma.vmem_to_hbm [thread:$0]  %s1178, 128, %s3, [#allocation7], 16, 16, 1
    $region37: #{tpu_custom_call.1} parent=1 // pred_fallthru
      _
    // Predicated region
    $region38: #{tpu_custom_call.1} parent=1 // pred_check
      _
    $region39: #{tpu_custom_call.1} parent=1 // pred_check_branch
      %1185 = sbr.rel (0) target = $region41
    $region40: #{tpu_custom_call.1} parent=1 // pred_region
      %1186 = dma.done [#allocation7], 128
    $region41: #{tpu_custom_call.1} parent=1 // pred_fallthru
      _
    %1187 = vsyncpa [#allocation6], 1
    %1188 = vsyncpa [#allocation9], 1
    %1189 = vsyncpa [#allocation7], 1

</llo_original>
